<compile_context>
chip_gen: v7x
topology: tpu7x:2x2x1
jax: 0.10.0
libtpu: 0.0.40
codegen_flags: <defaults>
</compile_context>

<pallas_src>
import functools

import jax
import jax.numpy as jnp
from jax.experimental import pallas as pl
from jax.experimental.pallas import tpu as pltpu

_LANE_CANDIDATES = (1024, 512, 256, 128)  # prefer wider lane-dense slabs (unmasked vst)
_DEFAULT_LANES = 512                      # used only when padding is unavoidable
_MAX_TILE_ELEMS = 1 << 20                 # ~4 MiB f32 per tile
_VMEM_LIMIT = 48 << 20                    # headroom for double-buffering + PRNG temps


# ----------------------------------------------------------------------------- kernels
def _mc_dropout_kernel(seed_ref, x_ref, o_ref, *, threshold, scale):
    # Independent stream per grid tile: hardware PRNG seeded with (seed, tile idx).
    pltpu.prng_seed(seed_ref[0], pl.program_id(0))
    bits = pltpu.bitcast(pltpu.prng_random_bits(x_ref.shape), jnp.uint32)
    keep = bits >= jnp.uint32(threshold)          # P(drop) = threshold / 2^32 = rate
    x = x_ref[...]
    o_ref[...] = jnp.where(keep, x * jnp.asarray(scale, x.dtype), jnp.zeros_like(x))


def _mc_dropout_kernel_hostbits(x_ref, bits_ref, o_ref, *, threshold, scale):
    # Fallback for non-TPU backends (interpret/CPU): bits streamed from the wrapper.
    keep = bits_ref[...] >= jnp.uint32(threshold)
    x = x_ref[...]
    o_ref[...] = jnp.where(keep, x * jnp.asarray(scale, x.dtype), jnp.zeros_like(x))


# ----------------------------------------------------------------------------- layout
def _choose_layout(total):
    """Pick (lanes, pad) so the flat array reshapes to (rows, lanes) without any
    wrapper-side pad/slice whenever the element count allows it."""
    for lanes in _LANE_CANDIDATES:
        if total % lanes == 0:
            return lanes, 0
    return _DEFAULT_LANES, (-total) % _DEFAULT_LANES


def _choose_tile_rows(rows, lanes):
    """Tile rows: multiple of 8, tile <= ~_MAX_TILE_ELEMS, and >= 2 grid tiles
    whenever rows >= 16 so the grid can shard across v7x's two TensorCores."""
    if rows < 16:
        return rows  # single block == full array (satisfies the (8,128) rule)
    max_rows = max(8, (_MAX_TILE_ELEMS // lanes) // 8 * 8)
    half_aligned = -(-(-(-rows // 2)) // 8) * 8   # ceil(rows/2) rounded up to mult. of 8
    return min(max_rows, half_aligned)            # always < rows for rows >= 16


# ----------------------------------------------------------------------------- wrapper
def _mc_dropout(x, rate, seed):
    assert 0.0 < rate < 1.0, f"mc_dropout rate must be in (0, 1), got {rate}"
    orig_shape = x.shape
    total = x.size

    lanes, pad = _choose_layout(total)
    rows = (total + pad) // lanes
    tile_rows = _choose_tile_rows(rows, lanes)
    num_tiles = (rows + tile_rows - 1) // tile_rows  # partial tail block is fine (elementwise)

    x_flat = x.reshape(-1)
    if pad:
        x_flat = jnp.pad(x_flat, (0, pad))
    x2d = x_flat.reshape(rows, lanes)

    threshold = min(int(round(rate * 2.0 ** 32)), 2 ** 32 - 1)
    scale = 1.0 / (1.0 - rate)

    if jax.default_backend() == "tpu":
        kernel = functools.partial(_mc_dropout_kernel, threshold=threshold, scale=scale)
        seed_arr = jnp.asarray([seed], dtype=jnp.int32)
        out2d = pl.pallas_call(
            kernel,
            out_shape=jax.ShapeDtypeStruct((rows, lanes), x.dtype),
            grid_spec=pltpu.PrefetchScalarGridSpec(
                num_scalar_prefetch=1,
                grid=(num_tiles,),
                in_specs=[pl.BlockSpec((tile_rows, lanes), lambda i, seed_ref: (i, 0))],
                out_specs=pl.BlockSpec((tile_rows, lanes), lambda i, seed_ref: (i, 0)),
            ),
            compiler_params=pltpu.CompilerParams(
                dimension_semantics=("parallel",),      # 2-TC sharding on v7x
                vmem_limit_bytes=_VMEM_LIMIT,
            ),
        )(seed_arr, x2d)
    else:
        # Portable fallback: random bits produced by the stateless host-side PRNG.
        kernel = functools.partial(_mc_dropout_kernel_hostbits, threshold=threshold, scale=scale)
        bits = jax.random.bits(jax.random.PRNGKey(seed), (rows, lanes), dtype=jnp.uint32)
        out2d = pl.pallas_call(
            kernel,
            out_shape=jax.ShapeDtypeStruct((rows, lanes), x.dtype),
            grid=(num_tiles,),
            in_specs=[pl.BlockSpec((tile_rows, lanes), lambda i: (i, 0)),
                      pl.BlockSpec((tile_rows, lanes), lambda i: (i, 0))],
            out_specs=pl.BlockSpec((tile_rows, lanes), lambda i: (i, 0)),
            compiler_params=pltpu.CompilerParams(
                dimension_semantics=("parallel",),
                vmem_limit_bytes=_VMEM_LIMIT,
            ),
        )(x2d, bits)

    out_flat = out2d.reshape(-1)
    if pad:
        out_flat = out_flat[:total]
    return out_flat.reshape(orig_shape)


class AbstractModelPallas:
    """JAX/Pallas equivalent of the abstract PyTorch module.

    config_args mirrors the PyTorch ctor: config_args['training'].get('mc_dropout').
    No learnable parameters exist in the reference __init__.
    """

    def __init__(self, config_args, device=None):
        self.device = device
        self.mc_dropout = config_args["training"].get("mc_dropout", None)
        self.training = False

    def keep_dropout_in_test(self):
        if self.mc_dropout:
            # LOGGER.warning equivalent (no logging dependency in-kernel script)
            print("WARNING: Keeping dropout activated during evaluation mode")
            self.training = True

    def print_summary(self, input_size):
        # TODO(synk): torchsummary's `summary()` has no Pallas/JAX equivalent here.
        pass

    def forward(self, x, seed=0):
        # Reference forward() is `pass` (abstract).  Identity path returns x with no
        # pallas_call at all; MC-dropout path runs the kernel.  NOTE: callers must
        # vary `seed` per forward pass for MC dropout to produce distinct masks.
        # TODO(synk): the PyTorch reference literally returns None; we return the
        #             tensor so there is a data path to the kernel.
        if self.mc_dropout and self.training:
            return _mc_dropout(x, float(self.mc_dropout), seed)
        return x

    __call__ = forward


if __name__ == "__main__":
    key = jax.random.PRNGKey(0)
    # small NCHW input consistent with a segmentation model's feature map
    x = jax.random.normal(key, (2, 4, 16, 16), dtype=jnp.float32)

    # 1) mc_dropout disabled: forward is a pure pass-through (reference forward = `pass`)
    model = AbstractModelPallas({"training": {}})
    y = jax.block_until_ready(model(x))
    assert y.shape == x.shape and y.dtype == x.dtype
    assert bool(jnp.allclose(y, x)), "identity path mismatch"

    # 2) mc_dropout enabled and kept active at eval time
    rate = 0.25
    model_mc = AbstractModelPallas({"training": {"mc_dropout": rate}})
    model_mc.keep_dropout_in_test()
    y_mc = jax.block_until_ready(model_mc(x, seed=123))
    assert y_mc.shape == x.shape and y_mc.dtype == x.dtype

    scale = 1.0 / (1.0 - rate)
    kept = jnp.abs(y_mc - x * scale) <= 1e-5 * (1.0 + jnp.abs(x) * scale)
    dropped = y_mc == 0
    # every element is either exactly dropped or exactly kept-and-scaled
    assert bool(jnp.all(kept | dropped)), "dropout scaling mismatch"
    drop_frac = float(1.0 - jnp.mean(kept.astype(jnp.float32)))
    assert 0.05 < drop_frac < 0.6, f"drop fraction looks off: {drop_frac}"

    # different seeds must give different masks (MC-dropout requirement)
    y_mc2 = jax.block_until_ready(model_mc(x, seed=456))
    assert not bool(jnp.allclose(y_mc, y_mc2)), "masks identical across seeds"

    print("KERNEL_OK")
</pallas_src>

<mosaic_0001>
module attributes {stable_mosaic.version = 11 : i64} {
  func.func @_mc_dropout_kernel_hostbits(%arg0: i32, %arg1: memref<2x1024xf32, #tpu.memory_space<vmem>>, %arg2: memref<2x1024xi32, #tpu.memory_space<vmem>>, %arg3: memref<2x1024xf32, #tpu.memory_space<vmem>>) attributes {dimension_semantics = [#tpu.dimension_semantics<parallel>], iteration_bounds = array<i64: 1>, scalar_prefetch = 0 : i64, scratch_operands = 0 : i64, tpu.core_type = #tpu.core_type<tc>, window_params = [{transform_indices = @transform_0, window_bounds = array<i64: 2, 1024>}, {transform_indices = @transform_1, window_bounds = array<i64: 2, 1024>}, {transform_indices = @transform_2, window_bounds = array<i64: 2, 1024>}]} {
    %c0 = arith.constant 0 : index
    %c0_0 = arith.constant 0 : index
    %0 = vector.load %arg2[%c0, %c0_0] : memref<2x1024xi32, #tpu.memory_space<vmem>>, vector<2x1024xi32>
    %c1073741824_i32 = arith.constant 1073741824 : i32
    %1 = vector.broadcast %c1073741824_i32 : i32 to vector<2x1024xi32>
    %2 = arith.cmpi uge, %0, %1 : vector<2x1024xi32>
    %c0_1 = arith.constant 0 : index
    %c0_2 = arith.constant 0 : index
    %3 = vector.load %arg1[%c0_1, %c0_2] : memref<2x1024xf32, #tpu.memory_space<vmem>>, vector<2x1024xf32>
    %cst = arith.constant 1.33333337 : f32
    %4 = vector.broadcast %cst : f32 to vector<2x1024xf32>
    %5 = arith.mulf %3, %4 : vector<2x1024xf32>
    %cst_3 = arith.constant 0.000000e+00 : f32
    %6 = vector.broadcast %cst_3 : f32 to vector<2x1024xf32>
    %7 = arith.select %2, %5, %6 : vector<2x1024xi1>, vector<2x1024xf32>
    %c0_4 = arith.constant 0 : index
    %c0_5 = arith.constant 0 : index
    %8 = vector.load %arg3[%c0_4, %c0_5] : memref<2x1024xf32, #tpu.memory_space<vmem>>, vector<2x1024xf32>
    tpu.vector_store %arg3[%c0_4, %c0_5], %7 {strides = array<i32>} : memref<2x1024xf32, #tpu.memory_space<vmem>>, vector<2x1024xf32>,
    return
  }
  func.func @transform_0(%arg0: i32) -> (i32, i32) {
    %c0_i32 = arith.constant 0 : i32
    %c0_i32_0 = arith.constant 0 : i32
    return %arg0, %c0_i32 : i32, i32
  }
  func.func @transform_1(%arg0: i32) -> (i32, i32) {
    %c0_i32 = arith.constant 0 : i32
    %c0_i32_0 = arith.constant 0 : i32
    return %arg0, %c0_i32 : i32, i32
  }
  func.func @transform_2(%arg0: i32) -> (i32, i32) {
    %c0_i32 = arith.constant 0 : i32
    %c0_i32_0 = arith.constant 0 : i32
    return %arg0, %c0_i32 : i32, i32
  }
}

</mosaic_0001>

<llo_original>
// kernel: tpu_custom_call.1
$region0: #{tpu_custom_call.1}
  #allocation0 [shape = 'u32[]', space=smem, size = 0x4, offset = 0x4, fixed_abs, tag = 'smem constant byte address 0x4 - core index']
  #allocation1 [shape = 'u32[144,128]{1,0:T(1,128)}', space=vmem, size = 0x12000, scoped, tag = 'internal scratch']
  %s0 = inlined_call_operand.hbm [shape: f32[2,1024], index: 0, kind: input, shape index: {}]
  %s1 = inlined_call_operand.hbm [shape: u32[2,1024], index: 1, kind: input, shape index: {}]
  %s2 = inlined_call_operand.hbm [shape: f32[2,1024], index: 2, kind: output, shape index: {}]
  %s3 = sld [smem:[#allocation0]]
  $region26: #{tpu_custom_call.1} parent=0
    _
  %s5 = ssub.s32 1, %s3
  %s6 = scalar_select 0, %s5, %s3
  $region1: #{tpu_custom_call.1} parent=0
    #allocation2 [shape = 'u8[8192]{0}', space=vmem, size = 0x2000, scoped, tag = 'input window, operand 0, single buffered']
    #allocation3 [shape = 's32[1]{0}', space=sflag, size = 0x4, scoped, tag = 'scoped memory for tpu_custom_call.1']
    #allocation4 [shape = 's32[1]{0}', space=sflag, size = 0x4, scoped, tag = 'scoped memory for tpu_custom_call.1']
    #allocation5 [shape = 'u8[8192]{0}', space=vmem, size = 0x2000, scoped, tag = 'input window, operand 1, single buffered']
    #allocation6 [shape = 's32[1]{0}', space=sflag, size = 0x4, scoped, tag = 'scoped memory for tpu_custom_call.1']
    #allocation7 [shape = 'u8[8192]{0}', space=vmem, size = 0x2000, scoped, tag = 'output window, operand 0, single buffered']
    %7 = vsyncpa [#allocation3], 0
    %8 = vsyncpa [#allocation6], 0
    %9 = vsyncpa [#allocation4], 0
    // Predicated region
    $region2: #{tpu_custom_call.1} parent=1 // pred_check
      _
    $region3: #{tpu_custom_call.1} parent=1 // pred_check_branch
      %11 = sbr.rel (0) target = $region5
    $region4: #{tpu_custom_call.1} parent=1 // pred_region
      %s13 = ssub.s32 256, 256
      %14 = vsyncadd [#allocation3], %s13
      %s16 = sshll.u32 [#allocation2], 4
      %s17 = int_to_ptr.vmem [resolvable:$true] %s16
      %19 = dma.hbm_to_vmem [thread:$0]  %s0, 256, %s17, [#allocation3]
    $region5: #{tpu_custom_call.1} parent=1 // pred_fallthru
      _
    // Predicated region
    $region6: #{tpu_custom_call.1} parent=1 // pred_check
      _
    $region7: #{tpu_custom_call.1} parent=1 // pred_check_branch
      %21 = sbr.rel (0) target = $region9
    $region8: #{tpu_custom_call.1} parent=1 // pred_region
      %s23 = ssub.s32 256, 256
      %24 = vsyncadd [#allocation6], %s23
      %s26 = sshll.u32 [#allocation5], 4
      %s27 = int_to_ptr.vmem [resolvable:$true] %s26
      %29 = dma.hbm_to_vmem [thread:$0]  %s1, 256, %s27, [#allocation6]
    $region9: #{tpu_custom_call.1} parent=1 // pred_fallthru
      _
    // Predicated region
    $region10: #{tpu_custom_call.1} parent=1 // pred_check
      _
    $region11: #{tpu_custom_call.1} parent=1 // pred_check_branch
      %31 = sbr.rel (0) target = $region13
    $region12: #{tpu_custom_call.1} parent=1 // pred_region
      %32 = dma.done [#allocation3], 256
    $region13: #{tpu_custom_call.1} parent=1 // pred_fallthru
      _
    // Predicated region
    $region14: #{tpu_custom_call.1} parent=1 // pred_check
      _
    $region15: #{tpu_custom_call.1} parent=1 // pred_check_branch
      %34 = sbr.rel (0) target = $region17
    $region16: #{tpu_custom_call.1} parent=1 // pred_region
      %35 = dma.done [#allocation6], 256
    $region17: #{tpu_custom_call.1} parent=1 // pred_fallthru
      _
    %v36 = vld [vmem:[#allocation5] sm:$0xff]
    %v37 = vld [vmem:[#allocation5 + $0x8] sm:$0xff]
    %vm38 = vcmp.ge.u32.totalorder %v36, 1073741824
    %vm39 = vcmp.ge.u32.totalorder %v37, 1073741824
    %v40 = vld [vmem:[#allocation2] sm:$0xff]
    %v41 = vld [vmem:[#allocation2 + $0x8] sm:$0xff]
    %v42 = vmul.f32 %v40, 1.3333334
    %v43 = vmul.f32 %v41, 1.3333334
    %v44 = vsel %vm38, %v42, 0.0
    %v45 = vsel %vm39, %v43, 0.0
    %46 = vst [vmem:[#allocation7] sm:$0xff] %v44
    %47 = vst [vmem:[#allocation7 + $0x8] sm:$0xff] %v45
    // Predicated region
    $region18: #{tpu_custom_call.1} parent=1 // pred_check
      _
    $region19: #{tpu_custom_call.1} parent=1 // pred_check_branch
      %49 = sbr.rel (0) target = $region21
    $region20: #{tpu_custom_call.1} parent=1 // pred_region
      %s51 = ssub.s32 256, 256
      %52 = vsyncadd [#allocation4], %s51
      %s54 = sshll.u32 [#allocation7], 4
      %s55 = int_to_ptr.vmem [resolvable:$true] %s54
      %57 = dma.vmem_to_hbm [thread:$0]  %s55, 256, %s2, [#allocation4]
    $region21: #{tpu_custom_call.1} parent=1 // pred_fallthru
      _
    // Predicated region
    $region22: #{tpu_custom_call.1} parent=1 // pred_check
      _
    $region23: #{tpu_custom_call.1} parent=1 // pred_check_branch
      %59 = sbr.rel (0) target = $region25
    $region24: #{tpu_custom_call.1} parent=1 // pred_region
      %60 = dma.done [#allocation4], 256
    $region25: #{tpu_custom_call.1} parent=1 // pred_fallthru
      _
    %61 = vsyncpa [#allocation3], 1
    %62 = vsyncpa [#allocation6], 1
    %63 = vsyncpa [#allocation4], 1

</llo_original>
